<compile_context>
chip_gen: v5e
topology: v5e:2x2
jax: 0.10.0
libtpu: 0.0.40
codegen_flags: <defaults>
</compile_context>

<pallas_src>
import functools

import jax
import jax.numpy as jnp
import numpy as np
from jax import lax
from jax.experimental import pallas as pl
from jax.experimental.pallas import tpu as pltpu


def _dice_tile_kernel(logits_ref, target_ref, *rest,
                      spatial, nclass, sigmoid, has_mask, has_tail):
    """One spatial tile -> per-(N, C) partial inter/union sums."""
    if has_mask:
        mask_ref, inter_ref, union_ref = rest
    else:
        inter_ref, union_ref = rest

    N = logits_ref.shape[0]
    tL = logits_ref.shape[-1]
    C = nclass
    l = pl.program_id(0)

    x = logits_ref[...].astype(jnp.float32)                   # (N, Cin, tL)

    valid = None
    if has_tail:
        lane = lax.broadcasted_iota(jnp.int32, (1, 1, tL), 2)
        valid = (l * tL + lane) < spatial                      # (1, 1, tL)
        # OOB lanes hold undefined data; zero them so exp stays finite (their
        # contribution is killed via the mask below).
        x = jnp.where(valid, x, 0.0)

    ch = lax.broadcasted_iota(jnp.int32, (N, C, tL), 1)        # channel ids

    if sigmoid:
        # get_probability sigmoid branch: pred = [1 - sigmoid(x), sigmoid(x)]
        e = jnp.exp(-x)                                        # (N, 1, tL)
        s = pl.reciprocal(1.0 + e)                             # sigmoid(x)
        pred = jnp.where(ch == 1, s, 1.0 - s)                  # (N, 2, tL)
    else:
        # Softmax over channels: 1 EUP reciprocal + C multiplies.
        xmax = jnp.max(x, axis=1, keepdims=True)
        e = jnp.exp(x - xmax)
        pred = e * pl.reciprocal(jnp.sum(e, axis=1, keepdims=True))

    tgt = target_ref[...].astype(jnp.int32)                    # (N, 1, tL)
    one_hot = tgt == ch                                        # (N, C, tL)

    m = None
    if has_mask:
        m = mask_ref[...].astype(jnp.float32)                  # (N, 1, tL)
        if has_tail:
            m = jnp.where(valid, m, 0.0)
    elif has_tail:
        m = valid.astype(jnp.float32)                          # (1, 1, tL)

    if m is None:
        pm = pred
        oh = jnp.where(one_hot, 1.0, 0.0)
    else:
        pm = pred * m                                          # factored once
        oh = jnp.where(one_hot, m, 0.0)                        # one_hot * m

    inter_ref[0] = jnp.sum(jnp.where(one_hot, pm, 0.0), axis=-1)   # (N, C)
    union_ref[0] = jnp.sum(pm + oh, axis=-1)                        # (N, C)


def _choose_tile(L, N, c_in, c_out, logit_bytes, tgt_bytes, mask_bytes,
                 tile_cap):
    """Largest 128-multiple lane tile that fits a conservative VMEM budget."""
    LANE = 128
    # Per-lane VMEM bytes: double-buffered input blocks + ~8 live f32 temps.
    per_lane = 2 * (logit_bytes * N * c_in + tgt_bytes * N + mask_bytes * N) \
        + 8 * 4 * N * c_out
    budget = 16 * 1024 * 1024          # leaves headroom under 32 MiB limit
    max_lanes = max(LANE, (budget // max(per_lane, 1)) // LANE * LANE)
    tl = max(LANE, min(tile_cap, max_lanes))
    if L <= tl:
        return L, 1, False             # single full-extent tile, no tail
    grid = -(-L // tl)
    return tl, grid, (L % tl) != 0


class MaskDiceLoss:
    """JAX/Pallas port of mask_DiceLoss (forward pass)."""

    DEFAULT_TILE_CAP = 32768

    def __init__(self, nclass, class_weights=None, smooth=1e-05):
        self.smooth = float(smooth)
        # class_weights is a frozen nn.Parameter in PyTorch and unused in
        # forward(); keep it for API parity.
        if class_weights is None:
            self.class_weights = jnp.ones((1, nclass), jnp.float32)
        else:
            cw = np.asarray(class_weights, dtype=np.float32)
            assert nclass == cw.shape[0]
            self.class_weights = jnp.asarray(cw)

    def __call__(self, logits, target, mask=None, tile_cap=None):
        if tile_cap is None:
            tile_cap = self.DEFAULT_TILE_CAP

        N, C0 = int(logits.shape[0]), int(logits.shape[1])
        L = int(np.prod(logits.shape[2:]))

        lg = jnp.reshape(logits, (N, C0, L))
        sigmoid = (C0 == 1)
        C = 2 if sigmoid else C0       # channel count after get_probability

        # Narrow side inputs: class ids fit in int8 (cuts HBM traffic).
        tgt_dtype = jnp.int8 if C <= 127 else jnp.int32
        tgt = jnp.reshape(target, (N, 1, L)).astype(tgt_dtype)

        has_mask = mask is not None
        inputs = [lg, tgt]
        if has_mask:
            m = jnp.reshape(mask, (N, 1, L))
            if m.dtype == jnp.bool_:
                m = m.astype(jnp.int8)   # stream 1 byte/px, widen in-kernel
            inputs.append(m)
            mask_bytes = m.dtype.itemsize
        else:
            mask_bytes = 0               # no all-ones mask is ever streamed

        tL, G, has_tail = _choose_tile(
            L, N, C0, C, lg.dtype.itemsize, tgt.dtype.itemsize, mask_bytes,
            tile_cap)

        kernel = functools.partial(
            _dice_tile_kernel, spatial=L, nclass=C, sigmoid=sigmoid,
            has_mask=has_mask, has_tail=has_tail)

        in_specs = [
            pl.BlockSpec((N, C0, tL), lambda l: (0, 0, l)),
            pl.BlockSpec((N, 1, tL), lambda l: (0, 0, l)),
        ]
        if has_mask:
            in_specs.append(pl.BlockSpec((N, 1, tL), lambda l: (0, 0, l)))

        out_shape = (jax.ShapeDtypeStruct((G, N, C), jnp.float32),
                     jax.ShapeDtypeStruct((G, N, C), jnp.float32))
        out_specs = (pl.BlockSpec((1, N, C), lambda l: (l, 0, 0)),
                     pl.BlockSpec((1, N, C), lambda l: (l, 0, 0)))

        inter_p, union_p = pl.pallas_call(
            kernel,
            grid=(G,),
            in_specs=in_specs,
            out_specs=out_specs,
            out_shape=out_shape,
            compiler_params=pltpu.CompilerParams(
                dimension_semantics=("parallel",),
                vmem_limit_bytes=32 * 1024 * 1024),
        )(*inputs)

        # Tiny (G, N, C) finalize in plain JAX (lets v7x shard tiles across
        # both TensorCores instead of serializing on a shared accumulator).
        inter = jnp.sum(inter_p, axis=0)
        union = jnp.sum(union_p, axis=0)
        dice = (2.0 * inter + self.smooth) / (union + self.smooth)
        return 1.0 - jnp.mean(dice)


def _reference_loss(logits, target, mask=None, smooth=1e-05):
    """Pure-JAX reference mirroring the PyTorch forward."""
    N, C = logits.shape[0], logits.shape[1]
    lg = jnp.reshape(logits, (N, C, -1)).astype(jnp.float32)
    if C > 1:
        pred = jax.nn.softmax(lg, axis=1)
        nclass = C
    else:
        p = jax.nn.sigmoid(lg)
        pred = jnp.concatenate([1.0 - p, p], axis=1)
        nclass = 2
    tg = jnp.reshape(target, (N, -1)).astype(jnp.int32)
    one_hot = jax.nn.one_hot(tg, nclass, axis=1, dtype=jnp.float32)
    inter = pred * one_hot
    union = pred + one_hot
    if mask is not None:
        m = jnp.reshape(mask, (N, 1, -1)).astype(jnp.float32)
        inter = (inter * m).sum(-1)
        union = (union * m).sum(-1)
    else:
        inter = inter.sum(-1)
        union = union.sum(-1)
    dice = (2.0 * inter + smooth) / (union + smooth)
    return 1.0 - dice.mean()


if __name__ == "__main__":
    key = jax.random.PRNGKey(0)
    k1, k2, k3, k4, k5, k6, k7, k8 = jax.random.split(key, 8)

    # Small case: N=2, C=4, 16x16 spatial (single full-extent tile).
    N, C, H, W = 2, 4, 16, 16
    logits = jax.random.normal(k1, (N, C, H, W), dtype=jnp.float32)
    target = jax.random.randint(k2, (N, 1, H, W), 0, C, dtype=jnp.int32)
    mask = (jax.random.uniform(k3, (N, 1, H, W)) > 0.3).astype(jnp.float32)

    loss_fn = MaskDiceLoss(nclass=C)
    checks = []

    # mask=None path (no mask streamed at all)
    checks.append((loss_fn(logits, target), _reference_loss(logits, target)))
    # f32 mask path
    checks.append((loss_fn(logits, target, mask),
                   _reference_loss(logits, target, mask)))
    # narrow (int8) mask streaming path — same values as the f32 mask
    checks.append((loss_fn(logits, target, mask.astype(jnp.int8)),
                   _reference_loss(logits, target, mask)))

    # Sigmoid (C==1) path — handled in-kernel (no wrapper concat).
    logits1 = jax.random.normal(k4, (N, 1, H, W), dtype=jnp.float32)
    target1 = jax.random.randint(k5, (N, 1, H, W), 0, 2, dtype=jnp.int32)
    loss_fn1 = MaskDiceLoss(nclass=2)
    checks.append((loss_fn1(logits1, target1, mask),
                   _reference_loss(logits1, target1, mask)))
    checks.append((loss_fn1(logits1, target1),
                   _reference_loss(logits1, target1)))

    # Multi-tile + ragged-tail path: force a small tile cap so L = 48*48 = 2304
    # splits into 5 tiles (last tile 256 lanes).
    H2 = W2 = 48
    logits2 = jax.random.normal(k6, (N, C, H2, W2), dtype=jnp.float32)
    target2 = jax.random.randint(k7, (N, 1, H2, W2), 0, C, dtype=jnp.int32)
    mask2 = (jax.random.uniform(k8, (N, 1, H2, W2)) > 0.5).astype(jnp.float32)
    checks.append((loss_fn(logits2, target2, tile_cap=512),
                   _reference_loss(logits2, target2)))
    checks.append((loss_fn(logits2, target2, mask2, tile_cap=512),
                   _reference_loss(logits2, target2, mask2)))

    # Tail that is not a multiple of 128: L = 50*50 = 2500, tile 512 -> tail 452.
    H3 = W3 = 50
    logits3 = jax.random.normal(k1, (N, C, H3, W3), dtype=jnp.float32)
    target3 = jax.random.randint(k2, (N, 1, H3, W3), 0, C, dtype=jnp.int32)
    checks.append((loss_fn(logits3, target3, tile_cap=512),
                   _reference_loss(logits3, target3)))

    for i, (out, ref) in enumerate(checks):
        out = jax.block_until_ready(out)
        ref = jax.block_until_ready(ref)
        assert jnp.allclose(out, ref, atol=1e-5, rtol=1e-5), (i, out, ref)

    print("KERNEL_OK")
</pallas_src>

<mosaic_0001>
module attributes {stable_mosaic.version = 11 : i64} {
  func.func @_dice_tile_kernel(%arg0: i32, %arg1: memref<2x4x256xf32, #tpu.memory_space<vmem>>, %arg2: memref<2x1x256xi8, #tpu.memory_space<vmem>>, %arg3: memref<1x2x4xf32, #tpu.memory_space<vmem>>, %arg4: memref<1x2x4xf32, #tpu.memory_space<vmem>>) attributes {dimension_semantics = [#tpu.dimension_semantics<parallel>], iteration_bounds = array<i64: 1>, scalar_prefetch = 0 : i64, scratch_operands = 0 : i64, tpu.core_type = #tpu.core_type<tc>, window_params = [{transform_indices = @transform_0, window_bounds = array<i64: 2, 4, 256>}, {transform_indices = @transform_1, window_bounds = array<i64: 2, 1, 256>}, {transform_indices = @transform_2, window_bounds = array<i64: 1, 2, 4>}, {transform_indices = @transform_3, window_bounds = array<i64: 1, 2, 4>}]} {
    %c0 = arith.constant 0 : index
    %c0_0 = arith.constant 0 : index
    %c0_1 = arith.constant 0 : index
    %0 = vector.load %arg1[%c0, %c0_0, %c0_1] : memref<2x4x256xf32, #tpu.memory_space<vmem>>, vector<2x4x256xf32>
    %1 = tpu.iota {dimensions = array<i32: 1>} : vector<2x4x256xi32>
    %cst = arith.constant dense<0xFF800000> : vector<2x256xf32>
    %2 = vector.multi_reduction <maximumf>, %0, %cst [1] : vector<2x4x256xf32> to vector<2x256xf32>
    %3 = vector.shape_cast %2 : vector<2x256xf32> to vector<2x1x256xf32>
    %4 = vector.broadcast %3 : vector<2x1x256xf32> to vector<2x4x256xf32>
    %5 = arith.subf %0, %4 : vector<2x4x256xf32>
    %6 = math.exp %5 : vector<2x4x256xf32>
    %cst_2 = arith.constant dense<0.000000e+00> : vector<2x256xf32>
    %7 = vector.multi_reduction <add>, %6, %cst_2 [1] : vector<2x4x256xf32> to vector<2x256xf32>
    %8 = vector.shape_cast %7 : vector<2x256xf32> to vector<2x1x256xf32>
    %9 = tpu.reciprocal %8 : vector<2x1x256xf32> -> vector<2x1x256xf32>
    %10 = vector.broadcast %9 : vector<2x1x256xf32> to vector<2x4x256xf32>
    %11 = arith.mulf %6, %10 : vector<2x4x256xf32>
    %c0_3 = arith.constant 0 : index
    %c0_4 = arith.constant 0 : index
    %c0_5 = arith.constant 0 : index
    %12 = vector.load %arg2[%c0_3, %c0_4, %c0_5] : memref<2x1x256xi8, #tpu.memory_space<vmem>>, vector<2x1x256xi8>
    %13 = arith.extsi %12 : vector<2x1x256xi8> to vector<2x1x256xi32>
    %14 = vector.broadcast %13 : vector<2x1x256xi32> to vector<2x4x256xi32>
    %15 = arith.cmpi eq, %14, %1 : vector<2x4x256xi32>
    %cst_6 = arith.constant 1.000000e+00 : f32
    %cst_7 = arith.constant 0.000000e+00 : f32
    %16 = vector.broadcast %cst_6 : f32 to vector<2x4x256xf32>
    %17 = vector.broadcast %cst_7 : f32 to vector<2x4x256xf32>
    %18 = arith.select %15, %16, %17 : vector<2x4x256xi1>, vector<2x4x256xf32>
    %cst_8 = arith.constant 0.000000e+00 : f32
    %19 = vector.broadcast %cst_8 : f32 to vector<2x4x256xf32>
    %20 = arith.select %15, %11, %19 : vector<2x4x256xi1>, vector<2x4x256xf32>
    %cst_9 = arith.constant dense<0.000000e+00> : vector<2x4xf32>
    %21 = vector.multi_reduction <add>, %20, %cst_9 [2] : vector<2x4x256xf32> to vector<2x4xf32>
    %c0_10 = arith.constant 0 : index
    %c0_11 = arith.constant 0 : index
    %c0_12 = arith.constant 0 : index
    %22 = vector.load %arg3[%c0_10, %c0_11, %c0_12] : memref<1x2x4xf32, #tpu.memory_space<vmem>>, vector<1x2x4xf32>
    %23 = vector.shape_cast %22 : vector<1x2x4xf32> to vector<2x4xf32>
    %24 = vector.shape_cast %21 : vector<2x4xf32> to vector<1x2x4xf32>
    tpu.vector_store %arg3[%c0_10, %c0_11, %c0_12], %24 {strides = array<i32>} : memref<1x2x4xf32, #tpu.memory_space<vmem>>, vector<1x2x4xf32>,
    %25 = arith.addf %11, %18 : vector<2x4x256xf32>
    %cst_13 = arith.constant dense<0.000000e+00> : vector<2x4xf32>
    %26 = vector.multi_reduction <add>, %25, %cst_13 [2] : vector<2x4x256xf32> to vector<2x4xf32>
    %c0_14 = arith.constant 0 : index
    %c0_15 = arith.constant 0 : index
    %c0_16 = arith.constant 0 : index
    %27 = vector.load %arg4[%c0_14, %c0_15, %c0_16] : memref<1x2x4xf32, #tpu.memory_space<vmem>>, vector<1x2x4xf32>
    %28 = vector.shape_cast %27 : vector<1x2x4xf32> to vector<2x4xf32>
    %29 = vector.shape_cast %26 : vector<2x4xf32> to vector<1x2x4xf32>
    tpu.vector_store %arg4[%c0_14, %c0_15, %c0_16], %29 {strides = array<i32>} : memref<1x2x4xf32, #tpu.memory_space<vmem>>, vector<1x2x4xf32>,
    return
  }
  func.func @transform_0(%arg0: i32) -> (i32, i32, i32) {
    %c0_i32 = arith.constant 0 : i32
    %c0_i32_0 = arith.constant 0 : i32
    %c0_i32_1 = arith.constant 0 : i32
    return %c0_i32, %c0_i32_0, %arg0 : i32, i32, i32
  }
  func.func @transform_1(%arg0: i32) -> (i32, i32, i32) {
    %c0_i32 = arith.constant 0 : i32
    %c0_i32_0 = arith.constant 0 : i32
    %c0_i32_1 = arith.constant 0 : i32
    return %c0_i32, %c0_i32_0, %arg0 : i32, i32, i32
  }
  func.func @transform_2(%arg0: i32) -> (i32, i32, i32) {
    %c0_i32 = arith.constant 0 : i32
    %c0_i32_0 = arith.constant 0 : i32
    %c0_i32_1 = arith.constant 0 : i32
    return %arg0, %c0_i32, %c0_i32_0 : i32, i32, i32
  }
  func.func @transform_3(%arg0: i32) -> (i32, i32, i32) {
    %c0_i32 = arith.constant 0 : i32
    %c0_i32_0 = arith.constant 0 : i32
    %c0_i32_1 = arith.constant 0 : i32
    return %arg0, %c0_i32, %c0_i32_0 : i32, i32, i32
  }
}

</mosaic_0001>

<llo_original>
// kernel: tpu_custom_call.1
$region0: #{tpu_custom_call.1}
  #allocation0 [shape = 'u32[]', space=smem, size = 0x4, offset = 0x4, fixed_abs, tag = 'smem constant byte address 0x4 - core index']
  #allocation1 [shape = 'u32[72,128]{1,0:T(1,128)}', space=vmem, size = 0x9000, scoped, tag = 'internal scratch']
  %s0 = inlined_call_operand.hbm [shape: f32[2,4,256], index: 0, kind: input, shape index: {}]
  %s1 = inlined_call_operand.vmem [shape: s8[2,1,256], index: 1, kind: input, shape index: {}]
  %s2 = inlined_call_operand.hbm [shape: f32[1,2,4], index: 2, kind: output, shape index: {0}]
  %s3 = inlined_call_operand.hbm [shape: f32[1,2,4], index: 3, kind: output, shape index: {1}]
  %4 = xla_tuple %s2, %s3
  %s5 = sld [smem:[#allocation0]]
  $region30: #{tpu_custom_call.1} parent=0
    _
  %s7 = ssub.s32 1, %s5
  %s8 = scalar_select 0, %s7, %s5
  $region1: #{tpu_custom_call.1} parent=0
    #allocation2 [shape = 'u8[8192]{0}', space=vmem, size = 0x2000, scoped, tag = 'input window, operand 0, single buffered']
    #allocation3 [shape = 's32[1]{0}', space=sflag, size = 0x4, scoped, tag = 'scoped memory for tpu_custom_call.1']
    #allocation4 [shape = 's32[1]{0}', space=sflag, size = 0x4, scoped, tag = 'scoped memory for tpu_custom_call.1']
    #allocation5 [shape = 'u8[1024]{0}', space=vmem, size = 0x400, scoped, tag = 'output window, operand 0, single buffered']
    #allocation6 [shape = 'u8[1024]{0}', space=vmem, size = 0x400, scoped, tag = 'output window, operand 1, single buffered']
    #allocation7 [shape = 's32[1]{0}', space=sflag, size = 0x4, scoped, tag = 'scoped memory for tpu_custom_call.1']
    %9 = vsyncpa [#allocation3], 0
    %10 = vsyncpa [#allocation4], 0
    %11 = vsyncpa [#allocation7], 0
    // Predicated region
    $region2: #{tpu_custom_call.1} parent=1 // pred_check
      _
    $region3: #{tpu_custom_call.1} parent=1 // pred_check_branch
      %13 = sbr.rel (0) target = $region5
    $region4: #{tpu_custom_call.1} parent=1 // pred_region
      %15 = vsyncadd [#allocation3], 0
      %s16 = sshll.u32 %s0, 4
      %s17 = int_to_ptr.hbm [resolvable:$true] %s16
      %s18 = sshll.u32 [#allocation2], 4
      %s19 = int_to_ptr.vmem [resolvable:$true] %s18
      %24 = dma.hbm_to_vmem [thread:$0]  %s17, 256, %s19, [#allocation3], 128, 128, 8
    $region5: #{tpu_custom_call.1} parent=1 // pred_fallthru
      _
    // Predicated region
    $region6: #{tpu_custom_call.1} parent=1 // pred_check
      _
    $region7: #{tpu_custom_call.1} parent=1 // pred_check_branch
      %26 = sbr.rel (0) target = $region9
    $region8: #{tpu_custom_call.1} parent=1 // pred_region
      _
    $region9: #{tpu_custom_call.1} parent=1 // pred_fallthru
      _
    // Predicated region
    $region10: #{tpu_custom_call.1} parent=1 // pred_check
      _
    $region11: #{tpu_custom_call.1} parent=1 // pred_check_branch
      %28 = sbr.rel (0) target = $region13
    $region12: #{tpu_custom_call.1} parent=1 // pred_region
      %30 = dma.done [#allocation3], 256
    $region13: #{tpu_custom_call.1} parent=1 // pred_fallthru
      _
    %v31 = vld [vmem:[#allocation2] sm:$0xff]
    %v32 = vld [vmem:[#allocation2 + $0x8] sm:$0xff]
    %v33 = vlaneseq
    %v34 = vshrl.u32 %v33, 7
    %37 = vst [vmem:[#allocation1] ss:$2 sm:$0xff] %v31
    %v38 = vld.sshfl [vmem:[#allocation1] sm:$0xff pattern:$0x75316420]
    %v39 = vld.sshfl [vmem:[#allocation1 + $0x8] sm:$0xff pattern:$0x75316420]
    %s40 = scalar_lea.vmem [#allocation1], 16
    %41 = vst [vmem:[%s40] ss:$2 sm:$0xff] %v32
    %v42 = vld.sshfl [vmem:[#allocation1 + $0x10] sm:$0xff pattern:$0x75316420]
    %v43 = vld.sshfl [vmem:[#allocation1 + $0x18] sm:$0xff pattern:$0x75316420]
    %vm48 = vcmask 1043456
    %v49 = vsel %vm48, %v38, -inf
    %v50 = vrot.slane %v49, 4
    %v51 = vmax.f32 %v49, %v50
    %v52 = vrot.slane %v51, 2
    %v53 = vmax.f32 %v51, %v52
    %v54 = vrot.slane %v53, 1
    %v55 = vmax.f32 %v53, %v54
    %v56 = vsel %vm48, %v39, -inf
    %v57 = vrot.slane %v56, 4
    %v58 = vmax.f32 %v56, %v57
    %v59 = vrot.slane %v58, 2
    %v60 = vmax.f32 %v58, %v59
    %v61 = vrot.slane %v60, 1
    %v62 = vmax.f32 %v60, %v61
    %v63 = vsel %vm48, %v42, -inf
    %v64 = vrot.slane %v63, 4
    %v65 = vmax.f32 %v63, %v64
    %v66 = vrot.slane %v65, 2
    %v67 = vmax.f32 %v65, %v66
    %v68 = vrot.slane %v67, 1
    %v69 = vmax.f32 %v67, %v68
    %v70 = vsel %vm48, %v43, -inf
    %v71 = vrot.slane %v70, 4
    %v72 = vmax.f32 %v70, %v71
    %v73 = vrot.slane %v72, 2
    %v74 = vmax.f32 %v72, %v73
    %v75 = vrot.slane %v74, 1
    %v76 = vmax.f32 %v74, %v75
    %v81 = vrot.slane %v62, 4
    %v82 = vrot.slane %v76, 4
    %v83 = vsel %vm48, %v55, %v81
    %v84 = vsel %vm48, %v69, %v82
    %v87 = vsub.f32 %v31, %v83
    %v88 = vsub.f32 %v32, %v84
    %v89 = vmul.f32 %v87, 1.442695
    %v90 = vpow.pop %v89
    %v91 = vmul.f32 %v88, 1.442695
    %v92 = vpow.pop %v91
    %95 = vst [vmem:[#allocation1] ss:$2 sm:$0xff] %v90
    %v96 = vld.sshfl [vmem:[#allocation1] sm:$0xff pattern:$0x75316420]
    %v97 = vld.sshfl [vmem:[#allocation1 + $0x8] sm:$0xff pattern:$0x75316420]
    %s98 = scalar_lea.vmem [#allocation1], 16
    %99 = vst [vmem:[%s98] ss:$2 sm:$0xff] %v92
    %v100 = vld.sshfl [vmem:[#allocation1 + $0x10] sm:$0xff pattern:$0x75316420]
    %v101 = vld.sshfl [vmem:[#allocation1 + $0x18] sm:$0xff pattern:$0x75316420]
    %v106 = vsel %vm48, %v96, 0.0
    %v107 = vrot.slane %v106, 4
    %v108 = vadd.f32 %v106, %v107
    %v109 = vrot.slane %v108, 2
    %v110 = vadd.f32 %v108, %v109
    %v111 = vrot.slane %v110, 1
    %v112 = vadd.f32 %v110, %v111
    %v113 = vsel %vm48, %v97, 0.0
    %v114 = vrot.slane %v113, 4
    %v115 = vadd.f32 %v113, %v114
    %v116 = vrot.slane %v115, 2
    %v117 = vadd.f32 %v115, %v116
    %v118 = vrot.slane %v117, 1
    %v119 = vadd.f32 %v117, %v118
    %v120 = vsel %vm48, %v100, 0.0
    %v121 = vrot.slane %v120, 4
    %v122 = vadd.f32 %v120, %v121
    %v123 = vrot.slane %v122, 2
    %v124 = vadd.f32 %v122, %v123
    %v125 = vrot.slane %v124, 1
    %v126 = vadd.f32 %v124, %v125
    %v127 = vsel %vm48, %v101, 0.0
    %v128 = vrot.slane %v127, 4
    %v129 = vadd.f32 %v127, %v128
    %v130 = vrot.slane %v129, 2
    %v131 = vadd.f32 %v129, %v130
    %v132 = vrot.slane %v131, 1
    %v133 = vadd.f32 %v131, %v132
    %v134 = vrcp.pop %v112
    %v135 = vmul.f32 %v112, %v134
    %v136 = vsub.f32 1.0, %v135
    %v137 = vmul.f32 %v134, %v136
    %v138 = vadd.f32 %v134, %v137
    %vm139 = vweird.f32 %v112
    %vm140 = vweird.f32 %v134
    %vm141 = vmor %vm139, %vm140
    %v142 = vsel %vm141, %v134, %v138
    %v143 = vand.u32 2147483647, %v112
    %vm144 = vcmp.eq.f32.partialorder %v143, 8.507059e+37
    %v145 = vand.u32 %v112, 2147483648
    %v146 = vor.u32 1.1754944e-38, %v145
    %v147 = vsel %vm144, %v146, %v142
    %v148 = vrcp.pop %v119
    %v149 = vmul.f32 %v119, %v148
    %v150 = vsub.f32 1.0, %v149
    %v151 = vmul.f32 %v148, %v150
    %v152 = vadd.f32 %v148, %v151
    %vm153 = vweird.f32 %v119
    %vm154 = vweird.f32 %v148
    %vm155 = vmor %vm153, %vm154
    %v156 = vsel %vm155, %v148, %v152
    %v157 = vand.u32 2147483647, %v119
    %vm158 = vcmp.eq.f32.partialorder %v157, 8.507059e+37
    %v159 = vand.u32 %v119, 2147483648
    %v160 = vor.u32 1.1754944e-38, %v159
    %v161 = vsel %vm158, %v160, %v156
    %v162 = vrcp.pop %v126
    %v163 = vmul.f32 %v126, %v162
    %v164 = vsub.f32 1.0, %v163
    %v165 = vmul.f32 %v162, %v164
    %v166 = vadd.f32 %v162, %v165
    %vm167 = vweird.f32 %v126
    %vm168 = vweird.f32 %v162
    %vm169 = vmor %vm167, %vm168
    %v170 = vsel %vm169, %v162, %v166
    %v171 = vand.u32 2147483647, %v126
    %vm172 = vcmp.eq.f32.partialorder %v171, 8.507059e+37
    %v173 = vand.u32 %v126, 2147483648
    %v174 = vor.u32 1.1754944e-38, %v173
    %v175 = vsel %vm172, %v174, %v170
    %v176 = vrcp.pop %v133
    %v177 = vmul.f32 %v133, %v176
    %v178 = vsub.f32 1.0, %v177
    %v179 = vmul.f32 %v176, %v178
    %v180 = vadd.f32 %v176, %v179
    %vm181 = vweird.f32 %v133
    %vm182 = vweird.f32 %v176
    %vm183 = vmor %vm181, %vm182
    %v184 = vsel %vm183, %v176, %v180
    %v185 = vand.u32 2147483647, %v133
    %vm186 = vcmp.eq.f32.partialorder %v185, 8.507059e+37
    %v187 = vand.u32 %v133, 2147483648
    %v188 = vor.u32 1.1754944e-38, %v187
    %v189 = vsel %vm186, %v188, %v184
    %v194 = vrot.slane %v161, 4
    %v195 = vrot.slane %v189, 4
    %v196 = vsel %vm48, %v147, %v194
    %v197 = vsel %vm48, %v175, %v195
    %v200 = vmul.f32 %v90, %v196
    %v201 = vmul.f32 %v92, %v197
    %v202 = vld [vmem:[%s1] sm:$0x3]
    %v203 = vld [vmem:[%s1 + $0x2] sm:$0x3]
    %v204 = vunpack.c.0.s8 %v202
    %v205 = vunpack.c.0.s8 %v203
    %v206 = vperm.slane %v204, 0
    %v207 = vperm.slane %v204, 4
    %v208 = vperm.slane %v205, 0
    %v209 = vperm.slane %v205, 4
    %v210 = vperm.slane %v206, 0
    %v211 = vperm.slane %v207, 0
    %v212 = vperm.slane %v208, 0
    %v213 = vperm.slane %v209, 0
    %vm214 = vcmp.eq.s32.totalorder %v210, %v34
    %vm215 = vcmp.eq.s32.totalorder %v211, %v34
    %vm216 = vcmp.eq.s32.totalorder %v212, %v34
    %vm217 = vcmp.eq.s32.totalorder %v213, %v34
    %v218 = vsel %vm214, 1.0, 0.0
    %v219 = vsel %vm215, 1.0, 0.0
    %v220 = vsel %vm216, 1.0, 0.0
    %v221 = vsel %vm217, 1.0, 0.0
    %224 = vst [vmem:[#allocation1] ss:$2 sm:$0xff] %v200
    %v225 = vld.sshfl [vmem:[#allocation1] sm:$0xff pattern:$0x75316420]
    %v226 = vld.sshfl [vmem:[#allocation1 + $0x8] sm:$0xff pattern:$0x75316420]
    %s227 = scalar_lea.vmem [#allocation1], 16
    %228 = vst [vmem:[%s227] ss:$2 sm:$0xff] %v201
    %v229 = vld.sshfl [vmem:[#allocation1 + $0x10] sm:$0xff pattern:$0x75316420]
    %v230 = vld.sshfl [vmem:[#allocation1 + $0x18] sm:$0xff pattern:$0x75316420]
    %v235 = vsel %vm214, %v225, 0.0
    %v236 = vsel %vm215, %v226, 0.0
    %v237 = vsel %vm216, %v229, 0.0
    %v238 = vsel %vm217, %v230, 0.0
    %v239 = vsel %vm48, %v235, 0.0
    %v240 = vsel %vm48, %v236, 0.0
    %v241 = vadd.f32 %v239, %v240
    %242 = vadd.xlane.f32.xlu0 %v241
    %v243 = vpop.xlane.xlu0 %242
    %v244 = vsel %vm48, %v237, 0.0
    %v245 = vsel %vm48, %v238, 0.0
    %v246 = vadd.f32 %v244, %v245
    %247 = vadd.xlane.f32.xlu0 %v246
    %v248 = vpop.xlane.xlu0 %247
    %v251 = vlaneseq
    %v252 = vand.u32 %v251, 127
    %v253 = vperm.slane %v243, %v252
    %v254 = vperm.slane %v248, %v252
    %vm255 = vcmask 1041409
    %v256 = vsel %vm255, %v254, %v253
    %vm258 = vcmask 25600
    %259 = vst.msk [vmem:[#allocation5] sm:$0x3] %vm258, %v256
    %v264 = vrot.slane %v219, 4
    %v265 = vrot.slane %v221, 4
    %v266 = vsel %vm48, %v218, %v264
    %v267 = vsel %vm48, %v220, %v265
    %v270 = vadd.f32 %v200, %v266
    %v271 = vadd.f32 %v201, %v267
    %274 = vst [vmem:[#allocation1] ss:$2 sm:$0xff] %v270
    %v275 = vld.sshfl [vmem:[#allocation1] sm:$0xff pattern:$0x75316420]
    %v276 = vld.sshfl [vmem:[#allocation1 + $0x8] sm:$0xff pattern:$0x75316420]
    %s277 = scalar_lea.vmem [#allocation1], 16
    %278 = vst [vmem:[%s277] ss:$2 sm:$0xff] %v271
    %v279 = vld.sshfl [vmem:[#allocation1 + $0x10] sm:$0xff pattern:$0x75316420]
    %v280 = vld.sshfl [vmem:[#allocation1 + $0x18] sm:$0xff pattern:$0x75316420]
    %v285 = vsel %vm48, %v275, 0.0
    %v286 = vsel %vm48, %v276, 0.0
    %v287 = vadd.f32 %v285, %v286
    %288 = vadd.xlane.f32.xlu0 %v287
    %v289 = vpop.xlane.xlu0 %288
    %v290 = vsel %vm48, %v279, 0.0
    %v291 = vsel %vm48, %v280, 0.0
    %v292 = vadd.f32 %v290, %v291
    %293 = vadd.xlane.f32.xlu0 %v292
    %v294 = vpop.xlane.xlu0 %293
    %v297 = vperm.slane %v289, %v252
    %v298 = vperm.slane %v294, %v252
    %v299 = vsel %vm255, %v298, %v297
    %301 = vst.msk [vmem:[#allocation6] sm:$0x3] %vm258, %v299
    // Predicated region
    $region14: #{tpu_custom_call.1} parent=1 // pred_check
      _
    $region15: #{tpu_custom_call.1} parent=1 // pred_check_branch
      %303 = sbr.rel (0) target = $region17
    $region16: #{tpu_custom_call.1} parent=1 // pred_region
      %305 = vsyncadd [#allocation4], 0
      %s307 = sshll.u32 [#allocation5], 4
      %s308 = int_to_ptr.vmem [resolvable:$true] %s307
      %s309 = sshll.u32 %s2, 4
      %s310 = int_to_ptr.hbm [resolvable:$true] %s309
      %312 = dma.vmem_to_hbm [thread:$0]  %s308, 32, %s310, [#allocation4]
    $region17: #{tpu_custom_call.1} parent=1 // pred_fallthru
      _
    // Predicated region
    $region18: #{tpu_custom_call.1} parent=1 // pred_check
      _
    $region19: #{tpu_custom_call.1} parent=1 // pred_check_branch
      %314 = sbr.rel (0) target = $region21
    $region20: #{tpu_custom_call.1} parent=1 // pred_region
      %316 = vsyncadd [#allocation7], 0
      %s318 = sshll.u32 [#allocation6], 4
      %s319 = int_to_ptr.vmem [resolvable:$true] %s318
      %s320 = sshll.u32 %s3, 4
      %s321 = int_to_ptr.hbm [resolvable:$true] %s320
      %323 = dma.vmem_to_hbm [thread:$0]  %s319, 32, %s321, [#allocation7]
    $region21: #{tpu_custom_call.1} parent=1 // pred_fallthru
      _
    // Predicated region
    $region22: #{tpu_custom_call.1} parent=1 // pred_check
      _
    $region23: #{tpu_custom_call.1} parent=1 // pred_check_branch
      %325 = sbr.rel (0) target = $region25
    $region24: #{tpu_custom_call.1} parent=1 // pred_region
      %327 = dma.done [#allocation4], 32
    $region25: #{tpu_custom_call.1} parent=1 // pred_fallthru
      _
    // Predicated region
    $region26: #{tpu_custom_call.1} parent=1 // pred_check
      _
    $region27: #{tpu_custom_call.1} parent=1 // pred_check_branch
      %329 = sbr.rel (0) target = $region29
    $region28: #{tpu_custom_call.1} parent=1 // pred_region
      %331 = dma.done [#allocation7], 32
    $region29: #{tpu_custom_call.1} parent=1 // pred_fallthru
      _
    %332 = vsyncpa [#allocation3], 1
    %333 = vsyncpa [#allocation4], 1
    %334 = vsyncpa [#allocation7], 1

</llo_original>
